<compile_context>
chip_gen: v7x
topology: tpu7x:2x2x1
jax: 0.10.0
libtpu: 0.0.40
codegen_flags: <defaults>
</compile_context>

<pallas_src>
import jax
import jax.numpy as jnp
from jax.experimental import pallas as pl
from jax.experimental.pallas import tpu as pltpu


def _round_up(x: int, m: int) -> int:
    return ((x + m - 1) // m) * m


def rotary_kernel(inv_freq_ref, emb_ref):
    # inv_freq_ref: (1, half) f32    emb_ref: (tile_seq, dim) out dtype
    tile_seq, dim = emb_ref.shape
    half = dim // 2
    # Absolute row index of this tile's first row.
    row0 = pl.program_id(0) * tile_seq
    # Exact integer positions, then cast (avoids f32 iota precision concerns).
    t = (row0 + jax.lax.broadcasted_iota(jnp.int32, (tile_seq, half), 0)).astype(
        jnp.float32
    )
    # Outer product via broadcasting against the (1, half) inv_freq row.
    freqs = (t * inv_freq_ref[...]).astype(emb_ref.dtype)  # (tile_seq, half)
    # emb = cat((freqs, freqs), -1): two direct slice-stores, no concat temp.
    emb_ref[:, :half] = freqs
    emb_ref[:, half:] = freqs


def rotary_embedding(x, inv_freq, *, out_dtype=jnp.float32, max_tile_seq=4096):
    """x: (batch, seq_len, ...) -- only seq_len (axis 1) is used, like the module."""
    seq_len = int(x.shape[1])
    half = int(inv_freq.shape[0])
    dim = 2 * half
    inv_freq_2d = inv_freq.reshape(1, half).astype(jnp.float32)

    # Row tile: multiple of 8 (f32 sublane), targeting ~4 MiB per output buffer
    # so the double-buffered pair (~8 MiB) stays under every chip's scoped-VMEM
    # default (16 MiB on v5e, 32 MiB on v6e/v7x) while amortizing the
    # ~0.35 us/grid-step pipeline overhead.
    bytes_per_row = dim * jnp.dtype(out_dtype).itemsize
    budget_rows = max(8, (4 * 1024 * 1024) // max(1, bytes_per_row))
    budget_rows = max(8, (budget_rows // 8) * 8)
    tile_seq = min(max_tile_seq, budget_rows, _round_up(seq_len, 8))

    # No padding: Pallas masks the ragged final block's out-of-bounds rows.
    grid = (pl.cdiv(seq_len, tile_seq),)

    emb = pl.pallas_call(
        rotary_kernel,
        out_shape=jax.ShapeDtypeStruct((seq_len, dim), out_dtype),
        grid=grid,
        in_specs=[pl.BlockSpec((1, half), lambda i: (0, 0))],
        out_specs=pl.BlockSpec((tile_seq, dim), lambda i: (i, 0)),
        compiler_params=pltpu.CompilerParams(
            dimension_semantics=("parallel",)
        ),
    )(inv_freq_2d)

    # emb[None, :, :] — leading size-1 dim is a metadata-only reshape.
    return emb[None, :, :]


def _reference(seq_len, inv_freq):
    t = jnp.arange(seq_len, dtype=jnp.float32)
    freqs = jnp.einsum("i,j->ij", t, inv_freq)
    return jnp.concatenate([freqs, freqs], axis=-1)[None, :, :]


def _make_inv_freq(dim):
    # Buffer init exactly as in the module __init__.
    return 1.0 / (10000.0 ** (jnp.arange(0, dim, 2, dtype=jnp.float32) / dim))


if __name__ == "__main__":
    key = jax.random.PRNGKey(0)

    # --- small case: dim=256, seq=8 (single tile, lane-dense stores) ---
    dim_small = 256
    batch, seq = 2, 8
    x = jax.random.normal(key, (batch, seq, dim_small), dtype=jnp.float32)
    inv_freq_small = _make_inv_freq(dim_small)

    emb = jax.block_until_ready(rotary_embedding(x, inv_freq_small))
    ref = _reference(seq, inv_freq_small)
    assert emb.shape == (1, seq, dim_small), emb.shape
    assert emb.dtype == jnp.float32
    assert jnp.allclose(emb, ref, atol=1e-6, rtol=1e-6)

    # --- module-sized dim=4096, ragged multi-tile case (no pad/slice path) ---
    dim_full = 4096
    seq2 = 600  # not a multiple of the row tile -> ragged final block, masked
    x2 = jnp.zeros((1, seq2, dim_full), dtype=jnp.float32)
    inv_freq_full = _make_inv_freq(dim_full)

    emb2 = jax.block_until_ready(rotary_embedding(x2, inv_freq_full))
    ref2 = _reference(seq2, inv_freq_full)
    assert emb2.shape == (1, seq2, dim_full), emb2.shape
    assert jnp.allclose(emb2, ref2, atol=1e-4, rtol=1e-6)

    print("KERNEL_OK")
</pallas_src>

<mosaic_0001>
module attributes {stable_mosaic.version = 11 : i64} {
  func.func @rotary_kernel(%arg0: i32, %arg1: memref<1x128xf32, #tpu.memory_space<vmem>>, %arg2: memref<8x256xf32, #tpu.memory_space<vmem>>) attributes {dimension_semantics = [#tpu.dimension_semantics<parallel>], iteration_bounds = array<i64: 1>, scalar_prefetch = 0 : i64, scratch_operands = 0 : i64, tpu.core_type = #tpu.core_type<tc>, window_params = [{pipeline_mode = #tpu.pipeline_mode<synchronous>, transform_indices = @transform_0, window_bounds = array<i64: 1, 128>}, {transform_indices = @transform_1, window_bounds = array<i64: 8, 256>}]} {
    %c8_i32 = arith.constant 8 : i32
    %0 = arith.muli %arg0, %c8_i32 : i32
    %1 = tpu.iota {dimensions = array<i32: 0>} : vector<8x128xi32>
    %2 = vector.broadcast %0 : i32 to vector<8x128xi32>
    %3 = arith.addi %2, %1 : vector<8x128xi32>
    %4 = arith.sitofp %3 : vector<8x128xi32> to vector<8x128xf32>
    %c0 = arith.constant 0 : index
    %c0_0 = arith.constant 0 : index
    %5 = vector.load %arg1[%c0, %c0_0] : memref<1x128xf32, #tpu.memory_space<vmem>>, vector<1x128xf32>
    %6 = vector.broadcast %5 : vector<1x128xf32> to vector<8x128xf32>
    %7 = arith.mulf %4, %6 : vector<8x128xf32>
    %c0_1 = arith.constant 0 : index
    %c0_2 = arith.constant 0 : index
    %8 = vector.load %arg2[%c0_1, %c0_2] : memref<8x256xf32, #tpu.memory_space<vmem>>, vector<8x128xf32>
    tpu.vector_store %arg2[%c0_1, %c0_2], %7 {strides = array<i32>} : memref<8x256xf32, #tpu.memory_space<vmem>>, vector<8x128xf32>,
    %c0_3 = arith.constant 0 : index
    %c128 = arith.constant 128 : index
    %9 = vector.load %arg2[%c0_3, %c128] : memref<8x256xf32, #tpu.memory_space<vmem>>, vector<8x128xf32>
    tpu.vector_store %arg2[%c0_3, %c128], %7 {strides = array<i32>} : memref<8x256xf32, #tpu.memory_space<vmem>>, vector<8x128xf32>,
    return
  }
  func.func @transform_0(%arg0: i32) -> (i32, i32) {
    %c0_i32 = arith.constant 0 : i32
    %c0_i32_0 = arith.constant 0 : i32
    %c0_i32_1 = arith.constant 0 : i32
    return %c0_i32, %c0_i32_0 : i32, i32
  }
  func.func @transform_1(%arg0: i32) -> (i32, i32) {
    %c0_i32 = arith.constant 0 : i32
    %c0_i32_0 = arith.constant 0 : i32
    return %arg0, %c0_i32 : i32, i32
  }
}

</mosaic_0001>

<llo_original>
// kernel: tpu_custom_call.1
$region0: #{tpu_custom_call.1}
  #allocation0 [shape = 'u32[]', space=smem, size = 0x4, offset = 0x4, fixed_abs, tag = 'smem constant byte address 0x4 - core index']
  #allocation1 [shape = 'u32[144,128]{1,0:T(1,128)}', space=vmem, size = 0x12000, scoped, tag = 'internal scratch']
  %s0 = inlined_call_operand.hbm [shape: f32[1,128], index: 0, kind: input, shape index: {}]
  %s1 = inlined_call_operand.hbm [shape: f32[8,256], index: 1, kind: output, shape index: {}]
  %s2 = sld [smem:[#allocation0]]
  $region18: #{tpu_custom_call.1} parent=0
    _
  %s4 = ssub.s32 1, %s2
  %s5 = scalar_select 0, %s4, %s2
  $region1: #{tpu_custom_call.1} parent=0
    #allocation2 [shape = 'u8[512]{0}', space=vmem, size = 0x400, scoped, tag = 'input window, operand 0, single buffered']
    #allocation3 [shape = 's32[1]{0}', space=sflag, size = 0x4, scoped, tag = 'scoped memory for tpu_custom_call.1']
    #allocation4 [shape = 's32[1]{0}', space=sflag, size = 0x4, scoped, tag = 'scoped memory for tpu_custom_call.1']
    #allocation5 [shape = 'u8[8192]{0}', space=vmem, size = 0x2000, scoped, tag = 'output window, operand 0, single buffered']
    %6 = vsyncpa [#allocation3], 0
    %7 = vsyncpa [#allocation4], 0
    // Predicated region
    $region2: #{tpu_custom_call.1} parent=1 // pred_check
      _
    $region3: #{tpu_custom_call.1} parent=1 // pred_check_branch
      %9 = sbr.rel (0) target = $region5
    $region4: #{tpu_custom_call.1} parent=1 // pred_region
      %s11 = ssub.s32 16, 16
      %12 = vsyncadd [#allocation3], %s11
      %s14 = sshll.u32 [#allocation2], 4
      %s15 = int_to_ptr.vmem [resolvable:$true] %s14
      %17 = dma.hbm_to_vmem [thread:$0]  %s0, 16, %s15, [#allocation3]
    $region5: #{tpu_custom_call.1} parent=1 // pred_fallthru
      _
    // Predicated region
    $region6: #{tpu_custom_call.1} parent=1 // pred_check
      _
    $region7: #{tpu_custom_call.1} parent=1 // pred_check_branch
      %19 = sbr.rel (0) target = $region9
    $region8: #{tpu_custom_call.1} parent=1 // pred_region
      %20 = dma.done [#allocation3], 16
    $region9: #{tpu_custom_call.1} parent=1 // pred_fallthru
      _
    %s21 = smul.u32 0, 8
    %v22 = vlaneseq
    %v23 = vshrl.u32 %v22, 7
    %v24 = vstv %s21
    %v25 = vadd.s32 %v24, %v23
    %v26 = vcvt.s32.f32 %v25
    %v27 = vld [vmem:[#allocation2] sm:$0x1]
    %v29 = vlaneseq
    %v30 = vshrl.u32 %v29, 7
    %v31 = vsub.s32 0, %v30
    %v32 = vrot.slane %v27, %v31
    %v34 = vmul.f32 %v26, %v32
    %35 = vst [vmem:[#allocation5] sm:$0xff] %v34
    %36 = vst [vmem:[#allocation5 + $0x8] sm:$0xff] %v34
    // Predicated region
    $region10: #{tpu_custom_call.1} parent=1 // pred_check
      _
    $region11: #{tpu_custom_call.1} parent=1 // pred_check_branch
      %38 = sbr.rel (0) target = $region13
    $region12: #{tpu_custom_call.1} parent=1 // pred_region
      %s40 = ssub.s32 256, 256
      %41 = vsyncadd [#allocation4], %s40
      %s43 = sshll.u32 [#allocation5], 4
      %s44 = int_to_ptr.vmem [resolvable:$true] %s43
      %46 = dma.vmem_to_hbm [thread:$0]  %s44, 256, %s1, [#allocation4]
    $region13: #{tpu_custom_call.1} parent=1 // pred_fallthru
      _
    // Predicated region
    $region14: #{tpu_custom_call.1} parent=1 // pred_check
      _
    $region15: #{tpu_custom_call.1} parent=1 // pred_check_branch
      %48 = sbr.rel (0) target = $region17
    $region16: #{tpu_custom_call.1} parent=1 // pred_region
      %49 = dma.done [#allocation4], 256
    $region17: #{tpu_custom_call.1} parent=1 // pred_fallthru
      _
    %50 = vsyncpa [#allocation3], 1
    %51 = vsyncpa [#allocation4], 1

</llo_original>
